<compile_context>
chip_gen: v5e
topology: v5e:2x2
jax: 0.10.0
libtpu: 0.0.40
codegen_flags: <defaults>
</compile_context>

<pallas_src>
import functools
import math

import numpy as np

import jax
import jax.numpy as jnp
from jax import lax
from jax.experimental import pallas as pl
from jax.experimental.pallas import tpu as pltpu

BN_EPS = 1e-5


def _round_up(x, m):
    return (x + m - 1) // m * m


# --------------------------------------------------------------------------------------
# Fused kernel: grid = (2, n_batch_tiles)
#   pass 0 (axis0 == 0): conv (one merged MXU matmul / image) + BN sum / sum-of-squares
#   pass 1 (axis0 == 1): normalize + ReLU from VMEM-resident activations, write output
# --------------------------------------------------------------------------------------
def _make_fused_kernel(*, k, wp, hwp, cin, cout_p, kkcin_p, b_tile, inv_count):
    def kernel(x_ref, w_ref, mask_ref, gb_ref, out_ref, patch_ref, acts_ref, stats_ref):
        # x_ref:     (b_tile*cin, flat)   zero-padded, flattened images of this batch tile
        # w_ref:     (cout_p, kkcin_p)    weights, columns ordered (kh, kw, ci), zero-padded K dim
        # mask_ref:  (1, hwp)             1.0 on real-width output columns, 0.0 on padded-width ones
        # gb_ref:    (2*cout_p, 1)        [gamma ; beta]
        # out_ref:   (b_tile, cout_p, hwp)
        # patch_ref: (kkcin_p, hwp)       in-VMEM im2col scratch
        # acts_ref:  (n_pad, cout_p, hwp) whole-batch conv activation (grid-resident)
        # stats_ref: (2*cout_p, 1)        [sum ; sum of squares] per channel (grid-resident)
        p = pl.program_id(0)   # 0 = conv + stats, 1 = bn + relu
        b = pl.program_id(1)   # batch-tile index

        @pl.when(jnp.logical_and(p == 0, b == 0))
        def _init():
            stats_ref[...] = jnp.zeros_like(stats_ref)
            # zero once so the (kkcin_p - k*k*cin) padded contraction rows stay exactly 0
            patch_ref[...] = jnp.zeros_like(patch_ref)

        @pl.when(p == 0)
        def _conv_and_stats():
            m = mask_ref[...]                                   # (1, hwp)
            w_mat = w_ref[...]                                  # (cout_p, kkcin_p)
            stat = jnp.zeros((2 * cout_p, 1), jnp.float32)
            for j in range(b_tile):                             # static unroll over tile's images
                # in-VMEM im2col: k*k lane-shifted slices stacked along sublanes
                for kh in range(k):
                    for kw in range(k):
                        t = kh * k + kw
                        off = kh * wp + kw
                        patch_ref[pl.ds(t * cin, cin), :] = (
                            x_ref[pl.ds(j * cin, cin), off:off + hwp])
                # one merged MXU matmul per image (K = kkcin_p instead of 9 tiny K=cin matmuls)
                acc = jnp.dot(w_mat, patch_ref[...],
                              preferred_element_type=jnp.float32)       # (cout_p, hwp)
                acc = acc * m                  # zero padded-width columns -> stats need no mask
                img = b * b_tile + j
                acts_ref[img] = acc
                both = jnp.concatenate([acc, acc * acc], axis=0)        # (2*cout_p, hwp)
                stat = stat + jnp.sum(both, axis=1, keepdims=True)      # one XLU reduce / image
            stats_ref[...] += stat             # single accumulator RMW per grid step

        @pl.when(p == 1)
        def _bn_relu():
            st = stats_ref[...]                                 # (2*cout_p, 1)
            s = st[0:cout_p, :]
            q = st[cout_p:, :]
            mean = s * inv_count
            var = jnp.maximum(q * inv_count - mean * mean, 0.0)  # biased (training-mode) variance
            inv_std = lax.rsqrt(var + BN_EPS)                     # EUP
            gamma = gb_ref[0:cout_p, :]
            beta = gb_ref[cout_p:, :]
            scale = gamma * inv_std                               # (cout_p, 1)
            shift = beta - mean * scale
            for j in range(b_tile):
                img = b * b_tile + j
                out_ref[j] = jnp.maximum(acts_ref[img] * scale + shift, 0.0)

    return kernel


# --------------------------------------------------------------------------------------
# Wrapper
# --------------------------------------------------------------------------------------
def base_conv_layers_forward(x_nchw, weight, bias, gamma, beta, *,
                             kernel_size=3, padding=1, batch_tile=None):
    """Conv2d(stride=1, 'same') -> BatchNorm2d(training) -> ReLU.  Input/output are NCHW."""
    del bias  # exactly cancelled by train-mode BN mean subtraction (dead work otherwise)

    n, cin, h, w = x_nchw.shape
    cout = weight.shape[0]
    k = kernel_size
    assert weight.shape == (cout, cin, k, k)
    assert 2 * padding == k - 1, "stride-1 'same' convolution assumed"

    hp, wp = h + 2 * padding, w + 2 * padding
    hwp = h * wp                                   # output columns per image (incl. padded width)
    cout_p = _round_up(cout, 8)                    # sublane-align output channels
    kkcin = k * k * cin
    kkcin_p = _round_up(kkcin, 8)                  # sublane-align the merged contraction dim
    flat = _round_up(max(hp * wp, hwp + (k - 1) * wp + (k - 1)), 128)  # lane-align + tap headroom

    # Batch tile: b_tile*cin a multiple of 8 (full sublane groups), up to ~16 images per grid step.
    sub = 8 // math.gcd(cin, 8)
    if batch_tile is None:
        batch_tile = sub * max(1, min(16 // sub, pl.cdiv(n, sub)))
    b_tile = batch_tile
    n_pad = _round_up(n, b_tile)                   # zero-padded images contribute 0 to the stats
    n_bt = n_pad // b_tile

    # Fused single-call design keeps the whole batch's conv activation VMEM-resident.
    acts_bytes = n_pad * cout_p * hwp * 4
    assert acts_bytes <= 24 * 1024 * 1024, "activation does not fit VMEM; two-phase fallback needed"

    # ---- host-side glue (tiny): zero-pad, flatten, repack weights.  No HBM im2col, no transposes.
    xpad = jnp.pad(x_nchw.astype(jnp.float32),
                   ((0, n_pad - n), (0, 0), (padding, padding), (padding, padding)))
    xflat = xpad.reshape(n_pad * cin, hp * wp)
    xflat = jnp.pad(xflat, ((0, 0), (0, flat - hp * wp)))          # (n_pad*cin, flat)

    # Weight columns ordered (kh, kw, ci) to match the in-kernel patch stacking.
    w_mat = jnp.transpose(weight.astype(jnp.float32), (0, 2, 3, 1)).reshape(cout, kkcin)
    w_mat = jnp.pad(w_mat, ((0, cout_p - cout), (0, kkcin_p - kkcin)))

    gamma_p = jnp.pad(gamma.astype(jnp.float32), (0, cout_p - cout), constant_values=1.0)
    beta_p = jnp.pad(beta.astype(jnp.float32), (0, cout_p - cout))
    gb = jnp.concatenate([gamma_p, beta_p]).reshape(2 * cout_p, 1)

    col = np.arange(hwp, dtype=np.int64)
    mask = jnp.asarray(((col % wp) < w).astype(np.float32).reshape(1, hwp))

    inv_count = 1.0 / float(n * h * w)             # real batch only

    kernel = _make_fused_kernel(k=k, wp=wp, hwp=hwp, cin=cin, cout_p=cout_p,
                                kkcin_p=kkcin_p, b_tile=b_tile, inv_count=inv_count)

    itemsize = 4
    out_flat = pl.pallas_call(
        kernel,
        out_shape=jax.ShapeDtypeStruct((n_pad, cout_p, hwp), jnp.float32),
        grid=(2, n_bt),
        in_specs=[
            # Input is only needed in pass 0; pin it to block 0 during pass 1 so it is not re-fetched.
            pl.BlockSpec((b_tile * cin, flat), lambda p, b: (b * (1 - p), 0)),
            pl.BlockSpec((cout_p, kkcin_p), lambda p, b: (0, 0)),
            pl.BlockSpec((1, hwp), lambda p, b: (0, 0)),
            pl.BlockSpec((2 * cout_p, 1), lambda p, b: (0, 0)),
        ],
        # Output blocks are produced only in pass 1; pin to block 0 during pass 0 so no undefined
        # block is ever committed to HBM (it is overwritten by pass 1 before the first writeback).
        out_specs=pl.BlockSpec((b_tile, cout_p, hwp), lambda p, b: (b * p, 0, 0)),
        scratch_shapes=[
            pltpu.VMEM((kkcin_p, hwp), jnp.float32),          # in-VMEM im2col patch
            pltpu.VMEM((n_pad, cout_p, hwp), jnp.float32),    # whole-batch conv activation
            pltpu.VMEM((2 * cout_p, 1), jnp.float32),         # [sum ; sum of squares] per channel
        ],
        compiler_params=pltpu.CompilerParams(
            # Both axes serial: the stats/activation scratches are carried across the whole grid.
            dimension_semantics=("arbitrary", "arbitrary"),
            vmem_limit_bytes=32 * 1024 * 1024,
        ),
        cost_estimate=pl.CostEstimate(
            flops=2 * n_pad * cout_p * kkcin_p * hwp + 6 * n_pad * cout_p * hwp,
            transcendentals=n_bt * cout_p,
            bytes_accessed=(n_pad * cin * flat + cout_p * kkcin_p + hwp + 2 * cout_p
                            + n_pad * cout_p * hwp) * itemsize,
        ),
    )(xflat, w_mat, mask, gb)

    # (n_pad, cout_p, h*wp) -> NCHW; drop padded width / channels / batch.
    # TODO(synk): keep the padded (h, wp) layout when the downstream consumer can take it — this
    #             slice is an extra full read+write of the output in XLA.
    return out_flat.reshape(n_pad, cout_p, h, wp)[:n, :cout, :, :w]


# --------------------------------------------------------------------------------------
# Pure-JAX reference (keeps the conv bias to verify it cancels under train-mode BN)
# --------------------------------------------------------------------------------------
def _reference(x_nchw, weight, bias, gamma, beta, *, padding=1):
    out = lax.conv_general_dilated(
        x_nchw, weight, window_strides=(1, 1),
        padding=[(padding, padding), (padding, padding)],
        dimension_numbers=("NCHW", "OIHW", "NCHW"),
    ) + bias.reshape(1, -1, 1, 1)
    mean = jnp.mean(out, axis=(0, 2, 3), keepdims=True)
    var = jnp.mean((out - mean) ** 2, axis=(0, 2, 3), keepdims=True)
    xhat = (out - mean) * lax.rsqrt(var + BN_EPS)
    y = xhat * gamma.reshape(1, -1, 1, 1) + beta.reshape(1, -1, 1, 1)
    return jnp.maximum(y, 0.0)


if __name__ == "__main__":
    key = jax.random.PRNGKey(0)
    kx, kwt, kb, kg, kbe = jax.random.split(key, 5)

    N, CIN, H, W = 2, 4, 16, 16
    COUT, K, PAD = 8, 3, 1

    x = jax.random.normal(kx, (N, CIN, H, W), dtype=jnp.float32)
    weight = jax.random.normal(kwt, (COUT, CIN, K, K), dtype=jnp.float32) * 0.1
    bias = jax.random.normal(kb, (COUT,), dtype=jnp.float32) * 0.1
    gamma = 1.0 + 0.1 * jax.random.normal(kg, (COUT,), dtype=jnp.float32)
    beta = 0.1 * jax.random.normal(kbe, (COUT,), dtype=jnp.float32)

    fwd = jax.jit(functools.partial(base_conv_layers_forward, kernel_size=K, padding=PAD))
    out = jax.block_until_ready(fwd(x, weight, bias, gamma, beta))

    ref = _reference(x, weight, bias, gamma, beta, padding=PAD)
    assert out.shape == (N, COUT, H, W)
    max_err = float(jnp.max(jnp.abs(out - ref)))
    assert jnp.allclose(out, ref, atol=1e-4, rtol=1e-4), max_err

    print("KERNEL_OK")
</pallas_src>

<mosaic_0001>
module attributes {stable_mosaic.version = 11 : i64} {
  func.func @kernel(%arg0: i32, %arg1: i32, %arg2: memref<8x384xf32, #tpu.memory_space<vmem>>, %arg3: memref<8x40xf32, #tpu.memory_space<vmem>>, %arg4: memref<1x288xf32, #tpu.memory_space<vmem>>, %arg5: memref<16x1xf32, #tpu.memory_space<vmem>>, %arg6: memref<2x8x288xf32, #tpu.memory_space<vmem>>, %arg7: memref<40x288xf32, #tpu.memory_space<vmem>>, %arg8: memref<2x8x288xf32, #tpu.memory_space<vmem>>, %arg9: memref<16x1xf32, #tpu.memory_space<vmem>>) attributes {dimension_semantics = [#tpu.dimension_semantics<arbitrary>, #tpu.dimension_semantics<arbitrary>], iteration_bounds = array<i64: 2, 1>, scalar_prefetch = 0 : i64, scratch_operands = 3 : i64, tpu.core_type = #tpu.core_type<tc>, window_params = [{transform_indices = @transform_0, window_bounds = array<i64: 8, 384>}, {pipeline_mode = #tpu.pipeline_mode<synchronous>, transform_indices = @transform_1, window_bounds = array<i64: 8, 40>}, {pipeline_mode = #tpu.pipeline_mode<synchronous>, transform_indices = @transform_2, window_bounds = array<i64: 1, 288>}, {pipeline_mode = #tpu.pipeline_mode<synchronous>, transform_indices = @transform_3, window_bounds = array<i64: 16, 1>}, {transform_indices = @transform_4, window_bounds = array<i64: 2, 8, 288>}]} {
    %c0_i32 = arith.constant 0 : i32
    %0 = arith.cmpi eq, %arg0, %c0_i32 : i32
    %c0_i32_0 = arith.constant 0 : i32
    %1 = arith.cmpi eq, %arg1, %c0_i32_0 : i32
    %2 = arith.andi %0, %1 : i1
    %3 = arith.extui %2 : i1 to i32
    %c0_i32_1 = arith.constant 0 : i32
    %4 = arith.cmpi ne, %3, %c0_i32_1 : i32
    scf.if %4 {
      %cst = arith.constant 0.000000e+00 : f32
      %11 = vector.broadcast %cst : f32 to vector<16x1xf32>
      %c0 = arith.constant 0 : index
      %c0_5 = arith.constant 0 : index
      %12 = vector.load %arg9[%c0, %c0_5] : memref<16x1xf32, #tpu.memory_space<vmem>>, vector<16x1xf32>
      tpu.vector_store %arg9[%c0, %c0_5], %11 {strides = array<i32>} : memref<16x1xf32, #tpu.memory_space<vmem>>, vector<16x1xf32>,
      %cst_6 = arith.constant 0.000000e+00 : f32
      %13 = vector.broadcast %cst_6 : f32 to vector<40x288xf32>
      %c0_7 = arith.constant 0 : index
      %c0_8 = arith.constant 0 : index
      %14 = vector.load %arg7[%c0_7, %c0_8] : memref<40x288xf32, #tpu.memory_space<vmem>>, vector<40x288xf32>
      tpu.vector_store %arg7[%c0_7, %c0_8], %13 {strides = array<i32>} : memref<40x288xf32, #tpu.memory_space<vmem>>, vector<40x288xf32>,
    } else {
    }
    %c0_i32_2 = arith.constant 0 : i32
    %5 = arith.cmpi eq, %arg0, %c0_i32_2 : i32
    %6 = arith.extui %5 : i1 to i32
    %c0_i32_3 = arith.constant 0 : i32
    %7 = arith.cmpi ne, %6, %c0_i32_3 : i32
    scf.if %7 {
      %c0 = arith.constant 0 : index
      %c0_5 = arith.constant 0 : index
      %11 = vector.load %arg4[%c0, %c0_5] : memref<1x288xf32, #tpu.memory_space<vmem>>, vector<1x288xf32>
      %c0_6 = arith.constant 0 : index
      %c0_7 = arith.constant 0 : index
      %12 = vector.load %arg3[%c0_6, %c0_7] : memref<8x40xf32, #tpu.memory_space<vmem>>, vector<8x40xf32>
      %cst = arith.constant 0.000000e+00 : f32
      %13 = vector.broadcast %cst : f32 to vector<16x1xf32>
      %c0_8 = arith.constant 0 : index
      %c0_9 = arith.constant 0 : index
      %14 = vector.load %arg2[%c0_8, %c0_9] : memref<8x384xf32, #tpu.memory_space<vmem>>, vector<4x288xf32>
      %c0_10 = arith.constant 0 : index
      %c0_11 = arith.constant 0 : index
      %15 = vector.load %arg7[%c0_10, %c0_11] : memref<40x288xf32, #tpu.memory_space<vmem>>, vector<4x288xf32>
      tpu.vector_store %arg7[%c0_10, %c0_11], %14 {strides = array<i32>} : memref<40x288xf32, #tpu.memory_space<vmem>>, vector<4x288xf32>,
      %c0_12 = arith.constant 0 : index
      %c1 = arith.constant 1 : index
      %16 = vector.load %arg2[%c0_12, %c1] : memref<8x384xf32, #tpu.memory_space<vmem>>, vector<4x288xf32>
      %c4 = arith.constant 4 : index
      %c0_13 = arith.constant 0 : index
      %17 = vector.load %arg7[%c4, %c0_13] : memref<40x288xf32, #tpu.memory_space<vmem>>, vector<4x288xf32>
      tpu.vector_store %arg7[%c4, %c0_13], %16 {strides = array<i32>} : memref<40x288xf32, #tpu.memory_space<vmem>>, vector<4x288xf32>,
      %c0_14 = arith.constant 0 : index
      %c2 = arith.constant 2 : index
      %18 = vector.load %arg2[%c0_14, %c2] : memref<8x384xf32, #tpu.memory_space<vmem>>, vector<4x288xf32>
      %c8 = arith.constant 8 : index
      %c0_15 = arith.constant 0 : index
      %19 = vector.load %arg7[%c8, %c0_15] : memref<40x288xf32, #tpu.memory_space<vmem>>, vector<4x288xf32>
      tpu.vector_store %arg7[%c8, %c0_15], %18 {strides = array<i32>} : memref<40x288xf32, #tpu.memory_space<vmem>>, vector<4x288xf32>,
      %c0_16 = arith.constant 0 : index
      %c18 = arith.constant 18 : index
      %20 = vector.load %arg2[%c0_16, %c18] : memref<8x384xf32, #tpu.memory_space<vmem>>, vector<4x288xf32>
      %c12 = arith.constant 12 : index
      %c0_17 = arith.constant 0 : index
      %21 = vector.load %arg7[%c12, %c0_17] : memref<40x288xf32, #tpu.memory_space<vmem>>, vector<4x288xf32>
      tpu.vector_store %arg7[%c12, %c0_17], %20 {strides = array<i32>} : memref<40x288xf32, #tpu.memory_space<vmem>>, vector<4x288xf32>,
      %c0_18 = arith.constant 0 : index
      %c19 = arith.constant 19 : index
      %22 = vector.load %arg2[%c0_18, %c19] : memref<8x384xf32, #tpu.memory_space<vmem>>, vector<4x288xf32>
      %c16 = arith.constant 16 : index
      %c0_19 = arith.constant 0 : index
      %23 = vector.load %arg7[%c16, %c0_19] : memref<40x288xf32, #tpu.memory_space<vmem>>, vector<4x288xf32>
      tpu.vector_store %arg7[%c16, %c0_19], %22 {strides = array<i32>} : memref<40x288xf32, #tpu.memory_space<vmem>>, vector<4x288xf32>,
      %c0_20 = arith.constant 0 : index
      %c20 = arith.constant 20 : index
      %24 = vector.load %arg2[%c0_20, %c20] : memref<8x384xf32, #tpu.memory_space<vmem>>, vector<4x288xf32>
      %c20_21 = arith.constant 20 : index
      %c0_22 = arith.constant 0 : index
      %25 = vector.load %arg7[%c20_21, %c0_22] : memref<40x288xf32, #tpu.memory_space<vmem>>, vector<4x288xf32>
      tpu.vector_store %arg7[%c20_21, %c0_22], %24 {strides = array<i32>} : memref<40x288xf32, #tpu.memory_space<vmem>>, vector<4x288xf32>,
      %c0_23 = arith.constant 0 : index
      %c36 = arith.constant 36 : index
      %26 = vector.load %arg2[%c0_23, %c36] : memref<8x384xf32, #tpu.memory_space<vmem>>, vector<4x288xf32>
      %c24 = arith.constant 24 : index
      %c0_24 = arith.constant 0 : index
      %27 = vector.load %arg7[%c24, %c0_24] : memref<40x288xf32, #tpu.memory_space<vmem>>, vector<4x288xf32>
      tpu.vector_store %arg7[%c24, %c0_24], %26 {strides = array<i32>} : memref<40x288xf32, #tpu.memory_space<vmem>>, vector<4x288xf32>,
      %c0_25 = arith.constant 0 : index
      %c37 = arith.constant 37 : index
      %28 = vector.load %arg2[%c0_25, %c37] : memref<8x384xf32, #tpu.memory_space<vmem>>, vector<4x288xf32>
      %c28 = arith.constant 28 : index
      %c0_26 = arith.constant 0 : index
      %29 = vector.load %arg7[%c28, %c0_26] : memref<40x288xf32, #tpu.memory_space<vmem>>, vector<4x288xf32>
      tpu.vector_store %arg7[%c28, %c0_26], %28 {strides = array<i32>} : memref<40x288xf32, #tpu.memory_space<vmem>>, vector<4x288xf32>,
      %c0_27 = arith.constant 0 : index
      %c38 = arith.constant 38 : index
      %30 = vector.load %arg2[%c0_27, %c38] : memref<8x384xf32, #tpu.memory_space<vmem>>, vector<4x288xf32>
      %c32 = arith.constant 32 : index
      %c0_28 = arith.constant 0 : index
      %31 = vector.load %arg7[%c32, %c0_28] : memref<40x288xf32, #tpu.memory_space<vmem>>, vector<4x288xf32>
      tpu.vector_store %arg7[%c32, %c0_28], %30 {strides = array<i32>} : memref<40x288xf32, #tpu.memory_space<vmem>>, vector<4x288xf32>,
      %c0_29 = arith.constant 0 : index
      %c0_30 = arith.constant 0 : index
      %32 = vector.load %arg7[%c0_29, %c0_30] : memref<40x288xf32, #tpu.memory_space<vmem>>, vector<40x288xf32>
      %cst_31 = arith.constant dense<0.000000e+00> : vector<8x288xf32>
      %33 = tpu.matmul %12, %32, %cst_31 {dimension_numbers = #tpu.dot_dimension_numbers<[1], [0], [0], [1], [0, 0, 1, 1], [], []>} : vector<8x40xf32>, vector<40x288xf32>, vector<8x288xf32> -> vector<8x288xf32>
      %34 = vector.broadcast %11 : vector<1x288xf32> to vector<8x288xf32>
      %35 = arith.mulf %33, %34 : vector<8x288xf32>
      %c2_i32 = arith.constant 2 : i32
      %36 = arith.muli %arg1, %c2_i32 : i32
      %c0_i32_32 = arith.constant 0 : i32
      %37 = arith.addi %36, %c0_i32_32 : i32
      %38 = arith.index_cast %37 : i32 to index
      %c0_33 = arith.constant 0 : index
      %c0_34 = arith.constant 0 : index
      %39 = vector.load %arg8[%38, %c0_33, %c0_34] : memref<2x8x288xf32, #tpu.memory_space<vmem>>, vector<1x8x288xf32>
      %40 = vector.shape_cast %39 : vector<1x8x288xf32> to vector<8x288xf32>
      %41 = vector.shape_cast %35 : vector<8x288xf32> to vector<1x8x288xf32>
      tpu.vector_store %arg8[%38, %c0_33, %c0_34], %41 {strides = array<i32>} : memref<2x8x288xf32, #tpu.memory_space<vmem>>, vector<1x8x288xf32>,
      %42 = arith.mulf %35, %35 : vector<8x288xf32>
      %43 = tpu.concatenate %35, %42 in 0 : vector<8x288xf32>, vector<8x288xf32> -> vector<16x288xf32>
      %cst_35 = arith.constant dense<0.000000e+00> : vector<16xf32>
      %44 = vector.multi_reduction <add>, %43, %cst_35 [1] : vector<16x288xf32> to vector<16xf32>
      %45 = vector.shape_cast %44 : vector<16xf32> to vector<16x1xf32>
      %46 = arith.addf %13, %45 : vector<16x1xf32>
      %c4_36 = arith.constant 4 : index
      %c0_37 = arith.constant 0 : index
      %47 = vector.load %arg2[%c4_36, %c0_37] : memref<8x384xf32, #tpu.memory_space<vmem>>, vector<4x288xf32>
      %c0_38 = arith.constant 0 : index
      %c0_39 = arith.constant 0 : index
      %48 = vector.load %arg7[%c0_38, %c0_39] : memref<40x288xf32, #tpu.memory_space<vmem>>, vector<4x288xf32>
      tpu.vector_store %arg7[%c0_38, %c0_39], %47 {strides = array<i32>} : memref<40x288xf32, #tpu.memory_space<vmem>>, vector<4x288xf32>,
      %c4_40 = arith.constant 4 : index
      %c1_41 = arith.constant 1 : index
      %49 = vector.load %arg2[%c4_40, %c1_41] : memref<8x384xf32, #tpu.memory_space<vmem>>, vector<4x288xf32>
      %c4_42 = arith.constant 4 : index
      %c0_43 = arith.constant 0 : index
      %50 = vector.load %arg7[%c4_42, %c0_43] : memref<40x288xf32, #tpu.memory_space<vmem>>, vector<4x288xf32>
      tpu.vector_store %arg7[%c4_42, %c0_43], %49 {strides = array<i32>} : memref<40x288xf32, #tpu.memory_space<vmem>>, vector<4x288xf32>,
      %c4_44 = arith.constant 4 : index
      %c2_45 = arith.constant 2 : index
      %51 = vector.load %arg2[%c4_44, %c2_45] : memref<8x384xf32, #tpu.memory_space<vmem>>, vector<4x288xf32>
      %c8_46 = arith.constant 8 : index
      %c0_47 = arith.constant 0 : index
      %52 = vector.load %arg7[%c8_46, %c0_47] : memref<40x288xf32, #tpu.memory_space<vmem>>, vector<4x288xf32>
      tpu.vector_store %arg7[%c8_46, %c0_47], %51 {strides = array<i32>} : memref<40x288xf32, #tpu.memory_space<vmem>>, vector<4x288xf32>,
      %c4_48 = arith.constant 4 : index
      %c18_49 = arith.constant 18 : index
      %53 = vector.load %arg2[%c4_48, %c18_49] : memref<8x384xf32, #tpu.memory_space<vmem>>, vector<4x288xf32>
      %c12_50 = arith.constant 12 : index
      %c0_51 = arith.constant 0 : index
      %54 = vector.load %arg7[%c12_50, %c0_51] : memref<40x288xf32, #tpu.memory_space<vmem>>, vector<4x288xf32>
      tpu.vector_store %arg7[%c12_50, %c0_51], %53 {strides = array<i32>} : memref<40x288xf32, #tpu.memory_space<vmem>>, vector<4x288xf32>,
      %c4_52 = arith.constant 4 : index
      %c19_53 = arith.constant 19 : index
      %55 = vector.load %arg2[%c4_52, %c19_53] : memref<8x384xf32, #tpu.memory_space<vmem>>, vector<4x288xf32>
      %c16_54 = arith.constant 16 : index
      %c0_55 = arith.constant 0 : index
      %56 = vector.load %arg7[%c16_54, %c0_55] : memref<40x288xf32, #tpu.memory_space<vmem>>, vector<4x288xf32>
      tpu.vector_store %arg7[%c16_54, %c0_55], %55 {strides = array<i32>} : memref<40x288xf32, #tpu.memory_space<vmem>>, vector<4x288xf32>,
      %c4_56 = arith.constant 4 : index
      %c20_57 = arith.constant 20 : index
      %57 = vector.load %arg2[%c4_56, %c20_57] : memref<8x384xf32, #tpu.memory_space<vmem>>, vector<4x288xf32>
      %c20_58 = arith.constant 20 : index
      %c0_59 = arith.constant 0 : index
      %58 = vector.load %arg7[%c20_58, %c0_59] : memref<40x288xf32, #tpu.memory_space<vmem>>, vector<4x288xf32>
      tpu.vector_store %arg7[%c20_58, %c0_59], %57 {strides = array<i32>} : memref<40x288xf32, #tpu.memory_space<vmem>>, vector<4x288xf32>,
      %c4_60 = arith.constant 4 : index
      %c36_61 = arith.constant 36 : index
      %59 = vector.load %arg2[%c4_60, %c36_61] : memref<8x384xf32, #tpu.memory_space<vmem>>, vector<4x288xf32>
      %c24_62 = arith.constant 24 : index
      %c0_63 = arith.constant 0 : index
      %60 = vector.load %arg7[%c24_62, %c0_63] : memref<40x288xf32, #tpu.memory_space<vmem>>, vector<4x288xf32>
      tpu.vector_store %arg7[%c24_62, %c0_63], %59 {strides = array<i32>} : memref<40x288xf32, #tpu.memory_space<vmem>>, vector<4x288xf32>,
      %c4_64 = arith.constant 4 : index
      %c37_65 = arith.constant 37 : index
      %61 = vector.load %arg2[%c4_64, %c37_65] : memref<8x384xf32, #tpu.memory_space<vmem>>, vector<4x288xf32>
      %c28_66 = arith.constant 28 : index
      %c0_67 = arith.constant 0 : index
      %62 = vector.load %arg7[%c28_66, %c0_67] : memref<40x288xf32, #tpu.memory_space<vmem>>, vector<4x288xf32>
      tpu.vector_store %arg7[%c28_66, %c0_67], %61 {strides = array<i32>} : memref<40x288xf32, #tpu.memory_space<vmem>>, vector<4x288xf32>,
      %c4_68 = arith.constant 4 : index
      %c38_69 = arith.constant 38 : index
      %63 = vector.load %arg2[%c4_68, %c38_69] : memref<8x384xf32, #tpu.memory_space<vmem>>, vector<4x288xf32>
      %c32_70 = arith.constant 32 : index
      %c0_71 = arith.constant 0 : index
      %64 = vector.load %arg7[%c32_70, %c0_71] : memref<40x288xf32, #tpu.memory_space<vmem>>, vector<4x288xf32>
      tpu.vector_store %arg7[%c32_70, %c0_71], %63 {strides = array<i32>} : memref<40x288xf32, #tpu.memory_space<vmem>>, vector<4x288xf32>,
      %c0_72 = arith.constant 0 : index
      %c0_73 = arith.constant 0 : index
      %65 = vector.load %arg7[%c0_72, %c0_73] : memref<40x288xf32, #tpu.memory_space<vmem>>, vector<40x288xf32>
      %cst_74 = arith.constant dense<0.000000e+00> : vector<8x288xf32>
      %66 = tpu.matmul %12, %65, %cst_74 {dimension_numbers = #tpu.dot_dimension_numbers<[1], [0], [0], [1], [0, 0, 1, 1], [], []>} : vector<8x40xf32>, vector<40x288xf32>, vector<8x288xf32> -> vector<8x288xf32>
      %67 = vector.broadcast %11 : vector<1x288xf32> to vector<8x288xf32>
      %68 = arith.mulf %66, %67 : vector<8x288xf32>
      %c2_i32_75 = arith.constant 2 : i32
      %69 = arith.muli %arg1, %c2_i32_75 : i32
      %c1_i32_76 = arith.constant 1 : i32
      %70 = arith.addi %69, %c1_i32_76 : i32
      %71 = arith.index_cast %70 : i32 to index
      %c0_77 = arith.constant 0 : index
      %c0_78 = arith.constant 0 : index
      %72 = vector.load %arg8[%71, %c0_77, %c0_78] : memref<2x8x288xf32, #tpu.memory_space<vmem>>, vector<1x8x288xf32>
      %73 = vector.shape_cast %72 : vector<1x8x288xf32> to vector<8x288xf32>
      %74 = vector.shape_cast %68 : vector<8x288xf32> to vector<1x8x288xf32>
      tpu.vector_store %arg8[%71, %c0_77, %c0_78], %74 {strides = array<i32>} : memref<2x8x288xf32, #tpu.memory_space<vmem>>, vector<1x8x288xf32>,
      %75 = arith.mulf %68, %68 : vector<8x288xf32>
      %76 = tpu.concatenate %68, %75 in 0 : vector<8x288xf32>, vector<8x288xf32> -> vector<16x288xf32>
      %cst_79 = arith.constant dense<0.000000e+00> : vector<16xf32>
      %77 = vector.multi_reduction <add>, %76, %cst_79 [1] : vector<16x288xf32> to vector<16xf32>
      %78 = vector.shape_cast %77 : vector<16xf32> to vector<16x1xf32>
      %79 = arith.addf %46, %78 : vector<16x1xf32>
      %c0_80 = arith.constant 0 : index
      %c0_81 = arith.constant 0 : index
      %80 = vector.load %arg9[%c0_80, %c0_81] : memref<16x1xf32, #tpu.memory_space<vmem>>, vector<16x1xf32>
      %81 = arith.addf %80, %79 : vector<16x1xf32>
      %c0_82 = arith.constant 0 : index
      %c0_83 = arith.constant 0 : index
      %82 = vector.load %arg9[%c0_82, %c0_83] : memref<16x1xf32, #tpu.memory_space<vmem>>, vector<16x1xf32>
      tpu.vector_store %arg9[%c0_82, %c0_83], %81 {strides = array<i32>} : memref<16x1xf32, #tpu.memory_space<vmem>>, vector<16x1xf32>,
    } else {
    }
    %c1_i32 = arith.constant 1 : i32
    %8 = arith.cmpi eq, %arg0, %c1_i32 : i32
    %9 = arith.extui %8 : i1 to i32
    %c0_i32_4 = arith.constant 0 : i32
    %10 = arith.cmpi ne, %9, %c0_i32_4 : i32
    scf.if %10 {
      %c0 = arith.constant 0 : index
      %c0_5 = arith.constant 0 : index
      %11 = vector.load %arg9[%c0, %c0_5] : memref<16x1xf32, #tpu.memory_space<vmem>>, vector<16x1xf32>
      %12 = vector.extract_strided_slice %11 {offsets = [0, 0], sizes = [8, 1], strides = [1, 1]} : vector<16x1xf32> to vector<8x1xf32>
      %13 = vector.extract_strided_slice %11 {offsets = [8, 0], sizes = [8, 1], strides = [1, 1]} : vector<16x1xf32> to vector<8x1xf32>
      %cst = arith.constant 0.001953125 : f32
      %14 = vector.broadcast %cst : f32 to vector<8x1xf32>
      %15 = arith.mulf %12, %14 : vector<8x1xf32>
      %cst_6 = arith.constant 0.001953125 : f32
      %16 = vector.broadcast %cst_6 : f32 to vector<8x1xf32>
      %17 = arith.mulf %13, %16 : vector<8x1xf32>
      %18 = arith.mulf %15, %15 : vector<8x1xf32>
      %19 = arith.subf %17, %18 : vector<8x1xf32>
      %cst_7 = arith.constant 0.000000e+00 : f32
      %20 = vector.broadcast %cst_7 : f32 to vector<8x1xf32>
      %21 = arith.maximumf %19, %20 : vector<8x1xf32>
      %cst_8 = arith.constant 9.99999974E-6 : f32
      %22 = vector.broadcast %cst_8 : f32 to vector<8x1xf32>
      %23 = arith.addf %21, %22 : vector<8x1xf32>
      %24 = math.rsqrt %23 : vector<8x1xf32>
      %c0_9 = arith.constant 0 : index
      %c0_10 = arith.constant 0 : index
      %25 = vector.load %arg5[%c0_9, %c0_10] : memref<16x1xf32, #tpu.memory_space<vmem>>, vector<8x1xf32>
      %c8 = arith.constant 8 : index
      %c0_11 = arith.constant 0 : index
      %26 = vector.load %arg5[%c8, %c0_11] : memref<16x1xf32, #tpu.memory_space<vmem>>, vector<8x1xf32>
      %27 = arith.mulf %25, %24 : vector<8x1xf32>
      %28 = arith.mulf %15, %27 : vector<8x1xf32>
      %29 = arith.subf %26, %28 : vector<8x1xf32>
      %c2_i32 = arith.constant 2 : i32
      %30 = arith.muli %arg1, %c2_i32 : i32
      %c0_i32_12 = arith.constant 0 : i32
      %31 = arith.addi %30, %c0_i32_12 : i32
      %32 = arith.index_cast %31 : i32 to index
      %c0_13 = arith.constant 0 : index
      %c0_14 = arith.constant 0 : index
      %33 = vector.load %arg8[%32, %c0_13, %c0_14] : memref<2x8x288xf32, #tpu.memory_space<vmem>>, vector<1x8x288xf32>
      %34 = vector.shape_cast %33 : vector<1x8x288xf32> to vector<8x288xf32>
      %35 = vector.broadcast %27 : vector<8x1xf32> to vector<8x288xf32>
      %36 = arith.mulf %34, %35 : vector<8x288xf32>
      %37 = vector.broadcast %29 : vector<8x1xf32> to vector<8x288xf32>
      %38 = arith.addf %36, %37 : vector<8x288xf32>
      %cst_15 = arith.constant 0.000000e+00 : f32
      %39 = vector.broadcast %cst_15 : f32 to vector<8x288xf32>
      %40 = arith.maximumf %38, %39 : vector<8x288xf32>
      %c0_16 = arith.constant 0 : index
      %c0_17 = arith.constant 0 : index
      %c0_18 = arith.constant 0 : index
      %41 = vector.load %arg6[%c0_16, %c0_17, %c0_18] : memref<2x8x288xf32, #tpu.memory_space<vmem>>, vector<1x8x288xf32>
      %42 = vector.shape_cast %41 : vector<1x8x288xf32> to vector<8x288xf32>
      %43 = vector.shape_cast %40 : vector<8x288xf32> to vector<1x8x288xf32>
      tpu.vector_store %arg6[%c0_16, %c0_17, %c0_18], %43 {strides = array<i32>} : memref<2x8x288xf32, #tpu.memory_space<vmem>>, vector<1x8x288xf32>,
      %c2_i32_19 = arith.constant 2 : i32
      %44 = arith.muli %arg1, %c2_i32_19 : i32
      %c1_i32_20 = arith.constant 1 : i32
      %45 = arith.addi %44, %c1_i32_20 : i32
      %46 = arith.index_cast %45 : i32 to index
      %c0_21 = arith.constant 0 : index
      %c0_22 = arith.constant 0 : index
      %47 = vector.load %arg8[%46, %c0_21, %c0_22] : memref<2x8x288xf32, #tpu.memory_space<vmem>>, vector<1x8x288xf32>
      %48 = vector.shape_cast %47 : vector<1x8x288xf32> to vector<8x288xf32>
      %49 = vector.broadcast %27 : vector<8x1xf32> to vector<8x288xf32>
      %50 = arith.mulf %48, %49 : vector<8x288xf32>
      %51 = vector.broadcast %29 : vector<8x1xf32> to vector<8x288xf32>
      %52 = arith.addf %50, %51 : vector<8x288xf32>
      %cst_23 = arith.constant 0.000000e+00 : f32
      %53 = vector.broadcast %cst_23 : f32 to vector<8x288xf32>
      %54 = arith.maximumf %52, %53 : vector<8x288xf32>
      %c1 = arith.constant 1 : index
      %c0_24 = arith.constant 0 : index
      %c0_25 = arith.constant 0 : index
      %55 = vector.load %arg6[%c1, %c0_24, %c0_25] : memref<2x8x288xf32, #tpu.memory_space<vmem>>, vector<1x8x288xf32>
      %56 = vector.shape_cast %55 : vector<1x8x288xf32> to vector<8x288xf32>
      %57 = vector.shape_cast %54 : vector<8x288xf32> to vector<1x8x288xf32>
      tpu.vector_store %arg6[%c1, %c0_24, %c0_25], %57 {strides = array<i32>} : memref<2x8x288xf32, #tpu.memory_space<vmem>>, vector<1x8x288xf32>,
    } else {
    }
    return
  }
  func.func @transform_0(%arg0: i32, %arg1: i32) -> (i32, i32) {
    %c1_i32 = arith.constant 1 : i32
    %0 = arith.subi %c1_i32, %arg0 : i32
    %1 = arith.muli %arg1, %0 : i32
    %c0_i32 = arith.constant 0 : i32
    %c0_i32_0 = arith.constant 0 : i32
    return %1, %c0_i32 : i32, i32
  }
  func.func @transform_1(%arg0: i32, %arg1: i32) -> (i32, i32) {
    %c0_i32 = arith.constant 0 : i32
    %c0_i32_0 = arith.constant 0 : i32
    %c0_i32_1 = arith.constant 0 : i32
    return %c0_i32, %c0_i32_0 : i32, i32
  }
  func.func @transform_2(%arg0: i32, %arg1: i32) -> (i32, i32) {
    %c0_i32 = arith.constant 0 : i32
    %c0_i32_0 = arith.constant 0 : i32
    %c0_i32_1 = arith.constant 0 : i32
    return %c0_i32, %c0_i32_0 : i32, i32
  }
  func.func @transform_3(%arg0: i32, %arg1: i32) -> (i32, i32) {
    %c0_i32 = arith.constant 0 : i32
    %c0_i32_0 = arith.constant 0 : i32
    %c0_i32_1 = arith.constant 0 : i32
    return %c0_i32, %c0_i32_0 : i32, i32
  }
  func.func @transform_4(%arg0: i32, %arg1: i32) -> (i32, i32, i32) {
    %0 = arith.muli %arg1, %arg0 : i32
    %c0_i32 = arith.constant 0 : i32
    %c0_i32_0 = arith.constant 0 : i32
    %c0_i32_1 = arith.constant 0 : i32
    return %0, %c0_i32, %c0_i32_0 : i32, i32, i32
  }
}

</mosaic_0001>

<llo_original>
// kernel: base_conv_layers_forward.1
$region0: #{base_conv_layers_forward.1}
  #allocation0 [shape = 'u32[]', space=smem, size = 0x4, offset = 0x4, fixed_abs, tag = 'smem constant byte address 0x4 - core index']
  #allocation1 [shape = 'u32[72,128]{1,0:T(1,128)}', space=vmem, size = 0x9000, scoped, tag = 'internal scratch']
  #allocation2 [shape = 'f32[40,288]{1,0:T(8,128)}', space=vmem, size = 0xf000, scoped, tag = 'scratch operand']
  #allocation3 [shape = 'f32[2,8,288]{2,1,0:T(8,128)}', space=vmem, size = 0x6000, scoped, tag = 'scratch operand']
  #allocation4 [shape = 'f32[16,1]{1,0:T(8,128)}', space=vmem, size = 0x2000, scoped, tag = 'scratch operand']
  %s0 = inlined_call_operand.vmem [shape: f32[8,384], index: 0, kind: input, shape index: {}]
  %s1 = inlined_call_operand.vmem [shape: f32[8,40], index: 1, kind: input, shape index: {}]
  %s2 = inlined_call_operand.vmem [shape: f32[1,288], index: 2, kind: input, shape index: {}]
  %s3 = inlined_call_operand.vmem [shape: f32[16,1], index: 3, kind: input, shape index: {}]
  %s4 = inlined_call_operand.vmem [shape: f32[2,8,288], index: 4, kind: output, shape index: {}]
  %s5 = sld [smem:[#allocation0]]
  $region61: #{base_conv_layers_forward.1} parent=0
    _
  %s7 = ssub.s32 1, %s5
  %s8 = scalar_select 0, %s7, %s5
  loop: start=0, step=1, limit=4
  $region2: #{base_conv_layers_forward.1} parent=0 // loop_pre_header
    _
  $region3: #{base_conv_layers_forward.1} parent=0 // loop_header
    %s10 = sphi 0, %s14
    %p11 = scmp.ge.s32.totalorder %s10, 4
    %s17 = sphi 0, %s29
    %s18 = sphi 0, %s25
    %s19 = sphi 0, %s17
    %s20 = sphi 0, %s18
    %s21 = sphi 0, %s19
    %s22 = sphi 0, %s20
    %s36 = sphi 0, %s38
    %s39 = sphi 0, %s36
    %s40 = sphi 0, %s39
    %s56 = sphi 0, %s40
    %s60 = sphi 0, %s60
    %s62 = sphi 0, %s60
    %s63 = sphi 0, %s62
    %s77 = sphi 0, %s63
    %s81 = sphi 0, %s81
    %s83 = sphi 0, %s81
    %s84 = sphi 0, %s83
    %s98 = sphi 0, %s84
    %s102 = sphi 0, %s102
    %s104 = sphi 0, %s102
    %s105 = sphi 0, %s104
    %s119 = sphi 0, %s105
    %s127 = sphi 0, %s129
    %s130 = sphi 0, %s127
    %s131 = sphi 0, %s130
    %s147 = sphi 0, %s131
  $region4: #{base_conv_layers_forward.1} parent=0 // loop_header_branch
    %13 = sbr.rel (%p11) target = $region8
  $region5: #{base_conv_layers_forward.1} parent=0 // loop_body
    %s15 = ssub.s32 %s10, 1
    %s16 = ssub.s32 %s10, 2
    %s23 = sadd.s32 1, %s18
    %p24 = scmp.ge.s32.totalorder %s23, 1
    %s25 = scalar_select %p24, 0, %s23
    %s26 = sadd.s32 1, %s17
    %s27 = scalar_select %p24, %s26, %s17
    %p28 = scmp.ge.s32.totalorder %s27, 2
    %s29 = scalar_select %p28, 0, %s27
    %s30 = ssub.s32 1, %s17
    %s31 = smul.u32 %s18, %s30
    %s32 = ssub.s32 1, %s29
    %s33 = smul.u32 %s25, %s32
    %s34 = ssub.s32 %s31, %s33
    %p35 = scmp.eq.s32.totalorder %s34, 0
    %s37 = sadd.s32 %s36, 1
    %s38 = scalar_select %p35, %s36, %s37
    %p41 = pneg %p35
    %p42 = scmp.eq.s32.totalorder %s10, 1
    %p43 = por %p41, %p42
    %p44 = scmp.ne.s32.totalorder %s36, %s39
    %p45 = scmp.eq.s32.totalorder %s10, 0
    %p46 = por %p44, %p45
    %p47 = scmp.ne.s32.totalorder %s36, %s39
    %p48 = scmp.eq.s32.totalorder %s15, 1
    %p49 = por %p47, %p48
    %p50 = scmp.ne.s32.totalorder %s39, %s40
    %p51 = scmp.eq.s32.totalorder %s15, 0
    %p52 = por %p50, %p51
    %p53 = scmp.ne.s32.totalorder %s39, %s40
    %p54 = scmp.eq.s32.totalorder %s16, 1
    %p55 = por %p53, %p54
    %p57 = scmp.ne.s32.totalorder %s40, %s56
    %p58 = scmp.eq.s32.totalorder %s16, 0
    %p59 = por %p57, %p58
    %s61 = sadd.s32 %s60, 1
    %p64 = scmp.eq.s32.totalorder %s10, 1
    %p65 = scmp.ne.s32.totalorder %s60, %s62
    %p66 = scmp.eq.s32.totalorder %s10, 0
    %p67 = por %p65, %p66
    %p68 = scmp.ne.s32.totalorder %s60, %s62
    %p69 = scmp.eq.s32.totalorder %s15, 1
    %p70 = por %p68, %p69
    %p71 = scmp.ne.s32.totalorder %s62, %s63
    %p72 = scmp.eq.s32.totalorder %s15, 0
    %p73 = por %p71, %p72
    %p74 = scmp.ne.s32.totalorder %s62, %s63
    %p75 = scmp.eq.s32.totalorder %s16, 1
    %p76 = por %p74, %p75
    %p78 = scmp.ne.s32.totalorder %s63, %s77
    %p79 = scmp.eq.s32.totalorder %s16, 0
    %p80 = por %p78, %p79
    %s82 = sadd.s32 %s81, 1
    %p85 = scmp.eq.s32.totalorder %s10, 1
    %p86 = scmp.ne.s32.totalorder %s81, %s83
    %p87 = scmp.eq.s32.totalorder %s10, 0
    %p88 = por %p86, %p87
    %p89 = scmp.ne.s32.totalorder %s81, %s83
    %p90 = scmp.eq.s32.totalorder %s15, 1
    %p91 = por %p89, %p90
    %p92 = scmp.ne.s32.totalorder %s83, %s84
    %p93 = scmp.eq.s32.totalorder %s15, 0
    %p94 = por %p92, %p93
    %p95 = scmp.ne.s32.totalorder %s83, %s84
    %p96 = scmp.eq.s32.totalorder %s16, 1
    %p97 = por %p95, %p96
    %p99 = scmp.ne.s32.totalorder %s84, %s98
    %p100 = scmp.eq.s32.totalorder %s16, 0
    %p101 = por %p99, %p100
    %s103 = sadd.s32 %s102, 1
    %p106 = scmp.eq.s32.totalorder %s10, 1
    %p107 = scmp.ne.s32.totalorder %s102, %s104
    %p108 = scmp.eq.s32.totalorder %s10, 0
    %p109 = por %p107, %p108
    %p110 = scmp.ne.s32.totalorder %s102, %s104
    %p111 = scmp.eq.s32.totalorder %s15, 1
    %p112 = por %p110, %p111
    %p113 = scmp.ne.s32.totalorder %s104, %s105
    %p114 = scmp.eq.s32.totalorder %s15, 0
    %p115 = por %p113, %p114
    %p116 = scmp.ne.s32.totalorder %s104, %s105
    %p117 = scmp.eq.s32.totalorder %s16, 1
    %p118 = por %p116, %p117
    %p120 = scmp.ne.s32.totalorder %s105, %s119
    %p121 = scmp.eq.s32.totalorder %s16, 0
    %p122 = por %p120, %p121
    %s123 = smul.u32 %s18, %s17
    %s124 = smul.u32 %s25, %s29
    %s125 = ssub.s32 %s123, %s124
    %p126 = scmp.eq.s32.totalorder %s125, 0
    %s128 = sadd.s32 %s127, 1
    %s129 = scalar_select %p126, %s127, %s128
    %p132 = pneg %p126
    %p133 = scmp.eq.s32.totalorder %s10, 1
    %p134 = por %p132, %p133
    %p135 = scmp.ne.s32.totalorder %s127, %s130
    %p136 = scmp.eq.s32.totalorder %s10, 0
    %p137 = por %p135, %p136
    %p138 = scmp.ne.s32.totalorder %s127, %s130
    %p139 = scmp.eq.s32.totalorder %s15, 1
    %p140 = por %p138, %p139
    %p141 = scmp.ne.s32.totalorder %s130, %s131
    %p142 = scmp.eq.s32.totalorder %s15, 0
    %p143 = por %p141, %p142
    %p144 = scmp.ne.s32.totalorder %s130, %s131
    %p145 = scmp.eq.s32.totalorder %s16, 1
    %p146 = por %p144, %p145
    %p148 = scmp.ne.s32.totalorder %s131, %s147
    %p149 = scmp.eq.s32.totalorder %s16, 0
    %p150 = por %p148, %p149
    %p151 = scmp.le.s32.totalorder 1, %s10
    %p152 = scmp.lt.s32.totalorder %s10, 3
    %p153 = pnand %p151, %p152
    %p154 = pneg %p153
    // Predicated region
    $region9: #{base_conv_layers_forward.1} parent=5 // pred_check
      _
    $region10: #{base_conv_layers_forward.1} parent=5 // pred_check_branch
      %156 = sbr.rel (%p153) target = $region12
    $region11: #{base_conv_layers_forward.1} parent=5 // pred_region
      %s157 = ssub.s32 %s10, 1
      // Predicated region
      $region13: #{base_conv_layers_forward.1} parent=11 // pred_check
        %p158 = pneg %p73
      $region14: #{base_conv_layers_forward.1} parent=11 // pred_check_branch
        %160 = sbr.rel (%p158) target = $region16
      $region15: #{base_conv_layers_forward.1} parent=11 // pred_region
        _
      $region16: #{base_conv_layers_forward.1} parent=11 // pred_fallthru
        _
      // Predicated region
      $region17: #{base_conv_layers_forward.1} parent=11 // pred_check
        %p161 = pneg %p94
      $region18: #{base_conv_layers_forward.1} parent=11 // pred_check_branch
        %163 = sbr.rel (%p161) target = $region20
      $region19: #{base_conv_layers_forward.1} parent=11 // pred_region
        _
      $region20: #{base_conv_layers_forward.1} parent=11 // pred_fallthru
        _
      // Predicated region
      $region21: #{base_conv_layers_forward.1} parent=11 // pred_check
        %p164 = pneg %p115
      $region22: #{base_conv_layers_forward.1} parent=11 // pred_check_branch
        %166 = sbr.rel (%p164) target = $region24
      $region23: #{base_conv_layers_forward.1} parent=11 // pred_region
        _
      $region24: #{base_conv_layers_forward.1} parent=11 // pred_fallthru
        _
    $region12: #{base_conv_layers_forward.1} parent=5 // pred_fallthru
      _
    %p167 = scmp.lt.s32.totalorder %s10, 2
    // Predicated region
    $region25: #{base_conv_layers_forward.1} parent=5 // pred_check
      %p168 = pneg %p167
    $region26: #{base_conv_layers_forward.1} parent=5 // pred_check_branch
      %170 = sbr.rel (%p168) target = $region28
    $region27: #{base_conv_layers_forward.1} parent=5 // pred_region
      // Predicated region
      $region29: #{base_conv_layers_forward.1} parent=27 // pred_check
        %p171 = pneg %p46
      $region30: #{base_conv_layers_forward.1} parent=27 // pred_check_branch
        %173 = sbr.rel (%p171) target = $region32
      $region31: #{base_conv_layers_forward.1} parent=27 // pred_region
        %s174 = ssub.s32 1, %s17
        %s175 = smul.u32 %s18, %s174
        %p176 = scmp.lt.s32.totalorder %s175, 0
        %s177 = scalar_select %p176, %s175, 0
        %s178 = smul.addr %s177, 3
        %s179 = smul.addr %s178, 8
        %s180 = scalar_lea.vmem %s0, %s179
        %s181 = ssub.s32 1, %s17
        %s182 = smul.u32 %s18, %s181
      $region32: #{base_conv_layers_forward.1} parent=27 // pred_fallthru
        _
    $region28: #{base_conv_layers_forward.1} parent=5 // pred_fallthru
      _
    %p183 = scmp.le.s32.totalorder 1, %s10
    %p184 = scmp.lt.s32.totalorder %s10, 3
    %p185 = pnand %p183, %p184
    %p186 = pneg %p185
    // Predicated region
    $region33: #{base_conv_layers_forward.1} parent=5 // pred_check
      _
    $region34: #{base_conv_layers_forward.1} parent=5 // pred_check_branch
      %188 = sbr.rel (%p185) target = $region36
    $region35: #{base_conv_layers_forward.1} parent=5 // pred_region
      %s189 = ssub.s32 %s10, 1
      %s190 = ssub.s32 1, %s19
      %s191 = smul.u32 %s20, %s190
      %p192 = scmp.lt.s32.totalorder %s191, 0
      %s193 = scalar_select %p192, %s191, 0
      %s194 = smul.addr %s193, 3
      %s195 = smul.addr %s194, 8
      %s196 = scalar_lea.vmem %s0, %s195
      %p197 = pneg %p52
      %p198 = pneg %p49
      %p199 = pneg %p73
      %p200 = pneg %p70
      %p201 = pneg %p94
      %p202 = pneg %p91
      %p203 = pneg %p115
      %p204 = pneg %p112
      %p205 = pneg %p143
      %p206 = pneg %p140
      %s207 = smul.u32 %s20, %s19
      %s208 = smul.u32 2, %s207
      %p209 = scmp.lt.s32.totalorder %s208, 1
      %s210 = scalar_select %p209, %s208, 1
      %s211 = smul.addr %s210, 3
      %s212 = smul.addr %s211, 8
      %s213 = scalar_lea.vmem %s4, %s212
      %s214 = ssub.s32 1, %s19
      %s215 = smul.u32 %s20, %s214
      %p216 = scmp.lt.s32.totalorder %s215, 0
      %s217 = scalar_select %p216, %s215, 0
      %s218 = smul.addr %s217, 3
      %s219 = smul.addr %s218, 8
      %s220 = scalar_lea.vmem %s0, %s219
      %s221 = ssub.s32 1, %s19
      %s222 = smul.u32 %s20, %s221
      %s223 = smul.u32 %s20, %s19
      %s224 = smul.u32 2, %s223
      %p225 = scmp.lt.s32.totalorder %s224, 1
      %s226 = scalar_select %p225, %s224, 1
      %s227 = smul.addr %s226, 3
      %s228 = smul.addr %s227, 8
      %s229 = scalar_lea.vmem %s4, %s228
      %s230 = smul.u32 %s20, %s19
      %s231 = smul.u32 2, %s230
      %p232 = scmp.eq.s32.totalorder %s19, 0
      %p233 = scmp.eq.s32.totalorder %s20, 0
      %p234 = pnand %p232, %p233
      %p235 = pneg %p234
      // Predicated region
      $region37: #{base_conv_layers_forward.1} parent=35 // pred_check
        _
      $region38: #{base_conv_layers_forward.1} parent=35 // pred_check_branch
        %237 = sbr.rel (%p234) target = $region40
      $region39: #{base_conv_layers_forward.1} parent=35 // pred_region
        %vm238 = vcmask 7168
        %239 = vst.msk [vmem:[#allocation4] sm:$0xff] %vm238, 0.0
        %240 = vst.msk [vmem:[#allocation4 + $0x8] sm:$0xff] %vm238, 0.0
        %241 = vst [vmem:[#allocation2] sm:$0xff] 0.0
        %242 = vst [vmem:[#allocation2 + $0x8] sm:$0xff] 0.0
        %vm243 = vcmask 261120
        %244 = vst.msk [vmem:[#allocation2 + $0x10] sm:$0xff] %vm243, 0.0
        %245 = vst [vmem:[#allocation2 + $0x18] sm:$0xff] 0.0
        %246 = vst [vmem:[#allocation2 + $0x20] sm:$0xff] 0.0
        %247 = vst.msk [vmem:[#allocation2 + $0x28] sm:$0xff] %vm243, 0.0
        %248 = vst [vmem:[#allocation2 + $0x30] sm:$0xff] 0.0
        %249 = vst [vmem:[#allocation2 + $0x38] sm:$0xff] 0.0
        %250 = vst.msk [vmem:[#allocation2 + $0x40] sm:$0xff] %vm243, 0.0
        %251 = vst [vmem:[#allocation2 + $0x48] sm:$0xff] 0.0
        %252 = vst [vmem:[#allocation2 + $0x50] sm:$0xff] 0.0
        %253 = vst.msk [vmem:[#allocation2 + $0x58] sm:$0xff] %vm243, 0.0
        %254 = vst [vmem:[#allocation2 + $0x60] sm:$0xff] 0.0
        %255 = vst [vmem:[#allocation2 + $0x68] sm:$0xff] 0.0
        %256 = vst.msk [vmem:[#allocation2 + $0x70] sm:$0xff] %vm243, 0.0
      $region40: #{base_conv_layers_forward.1} parent=35 // pred_fallthru
        _
      // Predicated region
      $region41: #{base_conv_layers_forward.1} parent=35 // pred_check
        %p257 = pneg %p232
      $region42: #{base_conv_layers_forward.1} parent=35 // pred_check_branch
        %259 = sbr.rel (%p257) target = $region44
      $region43: #{base_conv_layers_forward.1} parent=35 // pred_region
        %v260 = vld [vmem:[%s2] sm:$0x7]
        %v261 = vld [vmem:[%s1] sm:$0xff]
        %v262 = vld [vmem:[%s220] sm:$0xf]
        %v263 = vld [vmem:[%s220 + $0x8] sm:$0xf]
        %v264 = vld [vmem:[%s220 + $0x10] sm:$0xf]
        %265 = vst [vmem:[#allocation2] sm:$0xf] %v262
        %266 = vst [vmem:[#allocation2 + $0x8] sm:$0xf] %v263
        %vm267 = vcmask 257024
        %268 = vst.msk [vmem:[#allocation2 + $0x10] sm:$0xf] %vm267, %v264
        %v269 = vld [vmem:[%s220] sm:$0xf]
        %v270 = vld [vmem:[%s220 + $0x8] sm:$0xf]
        %v271 = vld [vmem:[%s220 + $0x10] sm:$0xf]
        %v275 = vrot.slane %v269, 4
        %v276 = vrot.slane %v270, 4
        %v277 = vrot.slane %v271, 4
        %278 = vrot.lane.b32.xlu0 %v275, 127
        %v279 = vpop.permute.xlu0 %278
        %280 = vrot.lane.b32.xlu0 %v276, 127
        %v281 = vpop.permute.xlu0 %280
        %282 = vrot.lane.b32.xlu0 %v277, 127
        %v283 = vpop.permute.xlu0 %282
        %vm284 = vcmask 1039360
        %v285 = vsel %vm284, %v279, %v281
        %v286 = vsel %vm284, %v281, %v283
        %290 = vst [vmem:[#allocation2] sm:$0xf0] %v285
        %291 = vst [vmem:[#allocation2 + $0x8] sm:$0xf0] %v286
        %vm292 = vcmask 261124
        %293 = vst.msk [vmem:[#allocation2 + $0x10] sm:$0xf0] %vm292, %v283
        %v294 = vld [vmem:[%s220] sm:$0xf]
        %v295 = vld [vmem:[%s220 + $0x8] sm:$0xf]
        %v296 = vld [vmem:[%s220 + $0x10] sm:$0xf]
        %300 = vrot.lane.b32.xlu0 %v294, 126
        %v301 = vpop.permute.xlu0 %300
        %302 = vrot.lane.b32.xlu0 %v295, 126
        %v303 = vpop.permute.xlu0 %302
        %304 = vrot.lane.b32.xlu0 %v296, 126
        %v305 = vpop.permute.xlu0 %304
        %vm306 = vcmask 1031168
        %v307 = vsel %vm306, %v301, %v303
        %v308 = vsel %vm306, %v303, %v305
        %312 = vst [vmem:[#allocation2 + $0x18] sm:$0xf] %v307
        %313 = vst [vmem:[#allocation2 + $0x20] sm:$0xf] %v308
        %314 = vst.msk [vmem:[#allocation2 + $0x28] sm:$0xf] %vm267, %v305
        %v315 = vld [vmem:[%s220] sm:$0xf]
        %v316 = vld [vmem:[%s220 + $0x8] sm:$0xf]
        %v317 = vld [vmem:[%s220 + $0x10] sm:$0xf]
        %v321 = vrot.slane %v315, 4
        %v322 = vrot.slane %v316, 4
        %v323 = vrot.slane %v317, 4
        %324 = vrot.lane.b32.xlu0 %v321, 110
        %v325 = vpop.permute.xlu0 %324
        %326 = vrot.lane.b32.xlu0 %v322, 110
        %v327 = vpop.permute.xlu0 %326
        %328 = vrot.lane.b32.xlu0 %v323, 110
        %v329 = vpop.permute.xlu0 %328
        %vm330 = vcmask 900096
        %v331 = vsel %vm330, %v325, %v327
        %v332 = vsel %vm330, %v327, %v329
        %336 = vst [vmem:[#allocation2 + $0x18] sm:$0xf0] %v331
        %337 = vst [vmem:[#allocation2 + $0x20] sm:$0xf0] %v332
        %338 = vst.msk [vmem:[#allocation2 + $0x28] sm:$0xf0] %vm292, %v329
        %v339 = vld [vmem:[%s220] sm:$0xf]
        %v340 = vld [vmem:[%s220 + $0x8] sm:$0xf]
        %v341 = vld [vmem:[%s220 + $0x10] sm:$0xf]
        %345 = vrot.lane.b32.xlu0 %v339, 109
        %v346 = vpop.permute.xlu0 %345
        %347 = vrot.lane.b32.xlu0 %v340, 109
        %v348 = vpop.permute.xlu0 %347
        %349 = vrot.lane.b32.xlu0 %v341, 109
        %v350 = vpop.permute.xlu0 %349
        %vm351 = vcmask 891904
        %v352 = vsel %vm351, %v346, %v348
        %v353 = vsel %vm351, %v348, %v350
        %357 = vst [vmem:[#allocation2 + $0x30] sm:$0xf] %v352
        %358 = vst [vmem:[#allocation2 + $0x38] sm:$0xf] %v353
        %359 = vst.msk [vmem:[#allocation2 + $0x40] sm:$0xf] %vm267, %v350
        %v360 = vld [vmem:[%s220] sm:$0xf]
        %v361 = vld [vmem:[%s220 + $0x8] sm:$0xf]
        %v362 = vld [vmem:[%s220 + $0x10] sm:$0xf]
        %v366 = vrot.slane %v360, 4
        %v367 = vrot.slane %v361, 4
        %v368 = vrot.slane %v362, 4
        %369 = vrot.lane.b32.xlu0 %v366, 108
        %v370 = vpop.permute.xlu0 %369
        %371 = vrot.lane.b32.xlu0 %v367, 108
        %v372 = vpop.permute.xlu0 %371
        %373 = vrot.lane.b32.xlu0 %v368, 108
        %v374 = vpop.permute.xlu0 %373
        %vm375 = vcmask 883712
        %v376 = vsel %vm375, %v370, %v372
        %v377 = vsel %vm375, %v372, %v374
        %381 = vst [vmem:[#allocation2 + $0x30] sm:$0xf0] %v376
        %382 = vst [vmem:[#allocation2 + $0x38] sm:$0xf0] %v377
        %383 = vst.msk [vmem:[#allocation2 + $0x40] sm:$0xf0] %vm292, %v374
        %v384 = vld [vmem:[%s220] sm:$0xf]
        %v385 = vld [vmem:[%s220 + $0x8] sm:$0xf]
        %v386 = vld [vmem:[%s220 + $0x10] sm:$0xf]
        %390 = vrot.lane.b32.xlu0 %v384, 92
        %v391 = vpop.permute.xlu0 %390
        %392 = vrot.lane.b32.xlu0 %v385, 92
        %v393 = vpop.permute.xlu0 %392
        %394 = vrot.lane.b32.xlu0 %v386, 92
        %v395 = vpop.permute.xlu0 %394
        %vm396 = vcmask 752640
        %v397 = vsel %vm396, %v391, %v393
        %v398 = vsel %vm396, %v393, %v395
        %402 = vst [vmem:[#allocation2 + $0x48] sm:$0xf] %v397
        %403 = vst [vmem:[#allocation2 + $0x50] sm:$0xf] %v398
        %404 = vst.msk [vmem:[#allocation2 + $0x58] sm:$0xf] %vm267, %v395
        %v405 = vld [vmem:[%s220] sm:$0xf]
        %v406 = vld [vmem:[%s220 + $0x8] sm:$0xf]
        %v407 = vld [vmem:[%s220 + $0x10] sm:$0xf]
        %v411 = vrot.slane %v405, 4
        %v412 = vrot.slane %v406, 4
        %v413 = vrot.slane %v407, 4
        %414 = vrot.lane.b32.xlu0 %v411, 91
        %v415 = vpop.permute.xlu0 %414
        %416 = vrot.lane.b32.xlu0 %v412, 91
        %v417 = vpop.permute.xlu0 %416
        %418 = vrot.lane.b32.xlu0 %v413, 91
        %v419 = vpop.permute.xlu0 %418
        %vm420 = vcmask 744448
        %v421 = vsel %vm420, %v415, %v417
        %v422 = vsel %vm420, %v417, %v419
        %426 = vst [vmem:[#allocation2 + $0x48] sm:$0xf0] %v421
        %427 = vst [vmem:[#allocation2 + $0x50] sm:$0xf0] %v422
        %428 = vst.msk [vmem:[#allocation2 + $0x58] sm:$0xf0] %vm292, %v419
        %v429 = vld [vmem:[%s220] sm:$0xf]
        %v430 = vld [vmem:[%s220 + $0x8] sm:$0xf]
        %v431 = vld [vmem:[%s220 + $0x10] sm:$0xf]
        %435 = vrot.lane.b32.xlu0 %v429, 90
        %v436 = vpop.permute.xlu0 %435
        %437 = vrot.lane.b32.xlu0 %v430, 90
        %v438 = vpop.permute.xlu0 %437
        %439 = vrot.lane.b32.xlu0 %v431, 90
        %v440 = vpop.permute.xlu0 %439
        %vm441 = vcmask 736256
        %v442 = vsel %vm441, %v436, %v438
        %v443 = vsel %vm441, %v438, %v440
        %447 = vst [vmem:[#allocation2 + $0x60] sm:$0xf] %v442
        %448 = vst [vmem:[#allocation2 + $0x68] sm:$0xf] %v443
        %449 = vst.msk [vmem:[#allocation2 + $0x70] sm:$0xf] %vm267, %v440
        %v450 = vld [vmem:[#allocation2] sm:$0xff]
        %v451 = vld [vmem:[#allocation2 + $0x8] sm:$0xff]
        %v452 = vld [vmem:[#allocation2 + $0x10] sm:$0xff]
        %v453 = vld [vmem:[#allocation2 + $0x18] sm:$0xff]
        %v454 = vld [vmem:[#allocation2 + $0x20] sm:$0xff]
        %v455 = vld [vmem:[#allocation2 + $0x28] sm:$0xff]
        %v456 = vld [vmem:[#allocation2 + $0x30] sm:$0xff]
        %v457 = vld [vmem:[#allocation2 + $0x38] sm:$0xff]
        %v458 = vld [vmem:[#allocation2 + $0x40] sm:$0xff]
        %v459 = vld [vmem:[#allocation2 + $0x48] sm:$0xff]
        %v460 = vld [vmem:[#allocation2 + $0x50] sm:$0xff]
        %v461 = vld [vmem:[#allocation2 + $0x58] sm:$0xff]
        %v462 = vld [vmem:[#allocation2 + $0x60] sm:$0xff]
        %v463 = vld [vmem:[#allocation2 + $0x68] sm:$0xff]
        %v464 = vld [vmem:[#allocation2 + $0x70] sm:$0xff]
        %vm465 = vcmask 326656
        %v467 = vsel %vm465, %v261, 0
        %469 = vmatpush.msra.mxu0 0.0
        %470 = vmatpush.msra.mxu0 0.0
        %471 = vmatpush.msra.mxu0 0.0
        %472 = vmatpush.msra.mxu0 0.0
        %473 = vmatpush.msra.mxu0 0.0
        %474 = vmatpush.msra.mxu0 0.0
        %475 = vmatpush.msra.mxu0 0.0
        %476 = vmatpush.msra.mxu0 0.0
        %477 = vmatpush.msra.mxu0 0.0
        %478 = vmatpush.msra.mxu0 0.0
        %479 = vmatpush.msra.mxu0 0.0
        %480 = vmatpush.msra.mxu0 %v462
        %481 = vmatpush.msra.mxu0 %v459
        %482 = vmatpush.msra.mxu0 %v456
        %483 = vmatpush.msra.mxu0 %v453
        %484 = vmatpush.msra.mxu0 %v450
        %485 = vmatmul.f32.gmra.mxu0 %v467
        %v486 = vpop.f32.mrf.mxu0
        %v487 = vadd.f32 0.0, %v486
        %488 = vdwg.mxu0
        %489 = vmatpush.msra.mxu0 0.0
        %490 = vmatpush.msra.mxu0 0.0
        %491 = vmatpush.msra.mxu0 0.0
        %492 = vmatpush.msra.mxu0 0.0
        %493 = vmatpush.msra.mxu0 0.0
        %494 = vmatpush.msra.mxu0 0.0
        %495 = vmatpush.msra.mxu0 0.0
        %496 = vmatpush.msra.mxu0 0.0
        %497 = vmatpush.msra.mxu0 0.0
        %498 = vmatpush.msra.mxu0 0.0
        %499 = vmatpush.msra.mxu0 0.0
        %500 = vmatpush.msra.mxu0 %v463
        %501 = vmatpush.msra.mxu0 %v460
        %502 = vmatpush.msra.mxu0 %v457
        %503 = vmatpush.msra.mxu0 %v454
        %504 = vmatpush.msra.mxu0 %v451
        %505 = vmatmul.f32.gmra.mxu0 %v467
        %v506 = vpop.f32.mrf.mxu0
        %v507 = vadd.f32 0.0, %v506
        %508 = vdwg.mxu0
        %509 = vmatpush.msra.mxu0 0.0
        %510 = vmatpush.msra.mxu0 0.0
        %511 = vmatpush.msra.mxu0 0.0
        %512 = vmatpush.msra.mxu0 0.0
        %513 = vmatpush.msra.mxu0 0.0
        %514 = vmatpush.msra.mxu0 0.0
        %515 = vmatpush.msra.mxu0 0.0
        %516 = vmatpush.msra.mxu0 0.0
        %517 = vmatpush.msra.mxu0 0.0
        %518 = vmatpush.msra.mxu0 0.0
        %519 = vmatpush.msra.mxu0 0.0
        %520 = vmatpush.msra.mxu0 %v464
        %521 = vmatpush.msra.mxu0 %v461
        %522 = vmatpush.msra.mxu0 %v458
        %523 = vmatpush.msra.mxu0 %v455
        %524 = vmatpush.msra.mxu0 %v452
        %525 = vmatmul.f32.gmra.mxu0 %v467
        %v526 = vpop.f32.mrf.mxu0
        %v527 = vadd.f32 0.0, %v526
        %528 = vdwg.mxu0
        %v530 = vperm.slane %v260, 0
        %v531 = vperm.slane %v260, 1
        %v532 = vperm.slane %v260, 2
        %v536 = vmul.f32 %v487, %v530
        %v537 = vmul.f32 %v507, %v531
        %v538 = vmul.f32 %v527, %v532
        %s539 = smul.u32 %s20, 2
        %s540 = smul.u32 %s539, 3
        %s541 = smul.addr %s540, 8
        %s542 = scalar_lea.vmem [#allocation3], %s541
        %543 = vst [vmem:[%s542] sm:$0xff] %v536
        %544 = vst [vmem:[%s542 + $0x8] sm:$0xff] %v537
        %vm545 = vcmask 261120
        %546 = vst.msk [vmem:[%s542 + $0x10] sm:$0xff] %vm545, %v538
        %v547 = vmul.f32 %v536, %v536
        %v548 = vmul.f32 %v537, %v537
        %v549 = vmul.f32 %v538, %v538
        %v550 = vadd.f32 %v536, %v537
        %v551 = vsel %vm545, %v538, 0.0
        %v552 = vadd.f32 %v550, %v551
        %553 = vadd.xlane.f32.xlu0 %v552
        %v554 = vpop.xlane.xlu0 %553
        %v555 = vadd.f32 %v547, %v548
        %v556 = vsel %vm545, %v549, 0.0
        %v557 = vadd.f32 %v555, %v556
        %558 = vadd.xlane.f32.xlu0 %v557
        %v559 = vpop.xlane.xlu0 %558
        %v560 = vadd.f32 %v554, 0.0
        %v561 = vadd.f32 %v559, 0.0
        %v562 = vld [vmem:[%s220] sm:$0xf0]
        %v563 = vld [vmem:[%s220 + $0x8] sm:$0xf0]
        %v564 = vld [vmem:[%s220 + $0x10] sm:$0xf0]
        %v568 = vrot.slane %v562, 4
        %v569 = vrot.slane %v563, 4
        %v570 = vrot.slane %v564, 4
        %574 = vst [vmem:[#allocation2] sm:$0xf] %v568
        %575 = vst [vmem:[#allocation2 + $0x8] sm:$0xf] %v569
        %576 = vst.msk [vmem:[#allocation2 + $0x10] sm:$0xf] %vm267, %v570
        %v577 = vld [vmem:[%s220] sm:$0xf0]
        %v578 = vld [vmem:[%s220 + $0x8] sm:$0xf0]
        %v579 = vld [vmem:[%s220 + $0x10] sm:$0xf0]
        %583 = vrot.lane.b32.xlu0 %v577, 127
        %v584 = vpop.permute.xlu0 %583
        %585 = vrot.lane.b32.xlu0 %v578, 127
        %v586 = vpop.permute.xlu0 %585
        %587 = vrot.lane.b32.xlu0 %v579, 127
        %v588 = vpop.permute.xlu0 %587
        %v589 = vsel %vm284, %v584, %v586
        %v590 = vsel %vm284, %v586, %v588
        %594 = vst [vmem:[#allocation2] sm:$0xf0] %v589
        %595 = vst [vmem:[#allocation2 + $0x8] sm:$0xf0] %v590
        %596 = vst.msk [vmem:[#allocation2 + $0x10] sm:$0xf0] %vm292, %v588
        %v597 = vld [vmem:[%s220] sm:$0xf0]
        %v598 = vld [vmem:[%s220 + $0x8] sm:$0xf0]
        %v599 = vld [vmem:[%s220 + $0x10] sm:$0xf0]
        %v603 = vrot.slane %v597, 4
        %v604 = vrot.slane %v598, 4
        %v605 = vrot.slane %v599, 4
        %606 = vrot.lane.b32.xlu0 %v603, 126
        %v607 = vpop.permute.xlu0 %606
        %608 = vrot.lane.b32.xlu0 %v604, 126
        %v609 = vpop.permute.xlu0 %608
        %610 = vrot.lane.b32.xlu0 %v605, 126
        %v611 = vpop.permute.xlu0 %610
        %v612 = vsel %vm306, %v607, %v609
        %v613 = vsel %vm306, %v609, %v611
        %617 = vst [vmem:[#allocation2 + $0x18] sm:$0xf] %v612
        %618 = vst [vmem:[#allocation2 + $0x20] sm:$0xf] %v613
        %619 = vst.msk [vmem:[#allocation2 + $0x28] sm:$0xf] %vm267, %v611
        %v620 = vld [vmem:[%s220] sm:$0xf0]
        %v621 = vld [vmem:[%s220 + $0x8] sm:$0xf0]
        %v622 = vld [vmem:[%s220 + $0x10] sm:$0xf0]
        %626 = vrot.lane.b32.xlu0 %v620, 110
        %v627 = vpop.permute.xlu0 %626
        %628 = vrot.lane.b32.xlu0 %v621, 110
        %v629 = vpop.permute.xlu0 %628
        %630 = vrot.lane.b32.xlu0 %v622, 110
        %v631 = vpop.permute.xlu0 %630
        %v632 = vsel %vm330, %v627, %v629
        %v633 = vsel %vm330, %v629, %v631
        %637 = vst [vmem:[#allocation2 + $0x18] sm:$0xf0] %v632
        %638 = vst [vmem:[#allocation2 + $0x20] sm:$0xf0] %v633
        %639 = vst.msk [vmem:[#allocation2 + $0x28] sm:$0xf0] %vm292, %v631
        %v640 = vld [vmem:[%s220] sm:$0xf0]
        %v641 = vld [vmem:[%s220 + $0x8] sm:$0xf0]
        %v642 = vld [vmem:[%s220 + $0x10] sm:$0xf0]
        %v646 = vrot.slane %v640, 4
        %v647 = vrot.slane %v641, 4
        %v648 = vrot.slane %v642, 4
        %649 = vrot.lane.b32.xlu0 %v646, 109
        %v650 = vpop.permute.xlu0 %649
        %651 = vrot.lane.b32.xlu0 %v647, 109
        %v652 = vpop.permute.xlu0 %651
        %653 = vrot.lane.b32.xlu0 %v648, 109
        %v654 = vpop.permute.xlu0 %653
        %v655 = vsel %vm351, %v650, %v652
        %v656 = vsel %vm351, %v652, %v654
        %660 = vst [vmem:[#allocation2 + $0x30] sm:$0xf] %v655
        %661 = vst [vmem:[#allocation2 + $0x38] sm:$0xf] %v656
        %662 = vst.msk [vmem:[#allocation2 + $0x40] sm:$0xf] %vm267, %v654
        %v663 = vld [vmem:[%s220] sm:$0xf0]
        %v664 = vld [vmem:[%s220 + $0x8] sm:$0xf0]
        %v665 = vld [vmem:[%s220 + $0x10] sm:$0xf0]
        %669 = vrot.lane.b32.xlu0 %v663, 108
        %v670 = vpop.permute.xlu0 %669
        %671 = vrot.lane.b32.xlu0 %v664, 108
        %v672 = vpop.permute.xlu0 %671
        %673 = vrot.lane.b32.xlu0 %v665, 108
        %v674 = vpop.permute.xlu0 %673
        %v675 = vsel %vm375, %v670, %v672
        %v676 = vsel %vm375, %v672, %v674
        %680 = vst [vmem:[#allocation2 + $0x30] sm:$0xf0] %v675
        %681 = vst [vmem:[#allocation2 + $0x38] sm:$0xf0] %v676
        %682 = vst.msk [vmem:[#allocation2 + $0x40] sm:$0xf0] %vm292, %v674
        %v683 = vld [vmem:[%s220] sm:$0xf0]
        %v684 = vld [vmem:[%s220 + $0x8] sm:$0xf0]
        %v685 = vld [vmem:[%s220 + $0x10] sm:$0xf0]
        %v689 = vrot.slane %v683, 4
        %v690 = vrot.slane %v684, 4
        %v691 = vrot.slane %v685, 4
        %692 = vrot.lane.b32.xlu0 %v689, 92
        %v693 = vpop.permute.xlu0 %692
        %694 = vrot.lane.b32.xlu0 %v690, 92
        %v695 = vpop.permute.xlu0 %694
        %696 = vrot.lane.b32.xlu0 %v691, 92
        %v697 = vpop.permute.xlu0 %696
        %v698 = vsel %vm396, %v693, %v695
        %v699 = vsel %vm396, %v695, %v697
        %703 = vst [vmem:[#allocation2 + $0x48] sm:$0xf] %v698
        %704 = vst [vmem:[#allocation2 + $0x50] sm:$0xf] %v699
        %705 = vst.msk [vmem:[#allocation2 + $0x58] sm:$0xf] %vm267, %v697
        %v706 = vld [vmem:[%s220] sm:$0xf0]
        %v707 = vld [vmem:[%s220 + $0x8] sm:$0xf0]
        %v708 = vld [vmem:[%s220 + $0x10] sm:$0xf0]
        %712 = vrot.lane.b32.xlu0 %v706, 91
        %v713 = vpop.permute.xlu0 %712
        %714 = vrot.lane.b32.xlu0 %v707, 91
        %v715 = vpop.permute.xlu0 %714
        %716 = vrot.lane.b32.xlu0 %v708, 91
        %v717 = vpop.permute.xlu0 %716
        %v718 = vsel %vm420, %v713, %v715
        %v719 = vsel %vm420, %v715, %v717
        %723 = vst [vmem:[#allocation2 + $0x48] sm:$0xf0] %v718
        %724 = vst [vmem:[#allocation2 + $0x50] sm:$0xf0] %v719
        %725 = vst.msk [vmem:[#allocation2 + $0x58] sm:$0xf0] %vm292, %v717
        %v726 = vld [vmem:[%s220] sm:$0xf0]
        %v727 = vld [vmem:[%s220 + $0x8] sm:$0xf0]
        %v728 = vld [vmem:[%s220 + $0x10] sm:$0xf0]
        %v732 = vrot.slane %v726, 4
        %v733 = vrot.slane %v727, 4
        %v734 = vrot.slane %v728, 4
        %735 = vrot.lane.b32.xlu0 %v732, 90
        %v736 = vpop.permute.xlu0 %735
        %737 = vrot.lane.b32.xlu0 %v733, 90
        %v738 = vpop.permute.xlu0 %737
        %739 = vrot.lane.b32.xlu0 %v734, 90
        %v740 = vpop.permute.xlu0 %739
        %v741 = vsel %vm441, %v736, %v738
        %v742 = vsel %vm441, %v738, %v740
        %746 = vst [vmem:[#allocation2 + $0x60] sm:$0xf] %v741
        %747 = vst [vmem:[#allocation2 + $0x68] sm:$0xf] %v742
        %748 = vst.msk [vmem:[#allocation2 + $0x70] sm:$0xf] %vm267, %v740
        %v749 = vld [vmem:[#allocation2] sm:$0xff]
        %v750 = vld [vmem:[#allocation2 + $0x8] sm:$0xff]
        %v751 = vld [vmem:[#allocation2 + $0x10] sm:$0xff]
        %v752 = vld [vmem:[#allocation2 + $0x18] sm:$0xff]
        %v753 = vld [vmem:[#allocation2 + $0x20] sm:$0xff]
        %v754 = vld [vmem:[#allocation2 + $0x28] sm:$0xff]
        %v755 = vld [vmem:[#allocation2 + $0x30] sm:$0xff]
        %v756 = vld [vmem:[#allocation2 + $0x38] sm:$0xff]
        %v757 = vld [vmem:[#allocation2 + $0x40] sm:$0xff]
        %v758 = vld [vmem:[#allocation2 + $0x48] sm:$0xff]
        %v759 = vld [vmem:[#allocation2 + $0x50] sm:$0xff]
        %v760 = vld [vmem:[#allocation2 + $0x58] sm:$0xff]
        %v761 = vld [vmem:[#allocation2 + $0x60] sm:$0xff]
        %v762 = vld [vmem:[#allocation2 + $0x68] sm:$0xff]
        %v763 = vld [vmem:[#allocation2 + $0x70] sm:$0xff]
        %764 = vmatpush.msra.mxu0 0.0
        %765 = vmatpush.msra.mxu0 0.0
        %766 = vmatpush.msra.mxu0 0.0
        %767 = vmatpush.msra.mxu0 0.0
        %768 = vmatpush.msra.mxu0 0.0
        %769 = vmatpush.msra.mxu0 0.0
        %770 = vmatpush.msra.mxu0 0.0
        %771 = vmatpush.msra.mxu0 0.0
        %772 = vmatpush.msra.mxu0 0.0
        %773 = vmatpush.msra.mxu0 0.0
        %774 = vmatpush.msra.mxu0 0.0
        %775 = vmatpush.msra.mxu0 %v761
        %776 = vmatpush.msra.mxu0 %v758
        %777 = vmatpush.msra.mxu0 %v755
        %778 = vmatpush.msra.mxu0 %v752
        %779 = vmatpush.msra.mxu0 %v749
        %780 = vmatmul.f32.gmra.mxu0 %v467
        %v781 = vpop.f32.mrf.mxu0
        %v782 = vadd.f32 0.0, %v781
        %783 = vdwg.mxu0
        %784 = vmatpush.msra.mxu0 0.0
        %785 = vmatpush.msra.mxu0 0.0
        %786 = vmatpush.msra.mxu0 0.0
        %787 = vmatpush.msra.mxu0 0.0
        %788 = vmatpush.msra.mxu0 0.0
        %789 = vmatpush.msra.mxu0 0.0
        %790 = vmatpush.msra.mxu0 0.0
        %791 = vmatpush.msra.mxu0 0.0
        %792 = vmatpush.msra.mxu0 0.0
        %793 = vmatpush.msra.mxu0 0.0
        %794 = vmatpush.msra.mxu0 0.0
        %795 = vmatpush.msra.mxu0 %v762
        %796 = vmatpush.msra.mxu0 %v759
        %797 = vmatpush.msra.mxu0 %v756
        %798 = vmatpush.msra.mxu0 %v753
        %799 = vmatpush.msra.mxu0 %v750
        %800 = vmatmul.f32.gmra.mxu0 %v467
        %v801 = vpop.f32.mrf.mxu0
        %v802 = vadd.f32 0.0, %v801
        %803 = vdwg.mxu0
        %804 = vmatpush.msra.mxu0 0.0
        %805 = vmatpush.msra.mxu0 0.0
        %806 = vmatpush.msra.mxu0 0.0
        %807 = vmatpush.msra.mxu0 0.0
        %808 = vmatpush.msra.mxu0 0.0
        %809 = vmatpush.msra.mxu0 0.0
        %810 = vmatpush.msra.mxu0 0.0
        %811 = vmatpush.msra.mxu0 0.0
        %812 = vmatpush.msra.mxu0 0.0
        %813 = vmatpush.msra.mxu0 0.0
        %814 = vmatpush.msra.mxu0 0.0
        %815 = vmatpush.msra.mxu0 %v763
        %816 = vmatpush.msra.mxu0 %v760
        %817 = vmatpush.msra.mxu0 %v757
        %818 = vmatpush.msra.mxu0 %v754
        %819 = vmatpush.msra.mxu0 %v751
        %820 = vmatmul.f32.gmra.mxu0 %v467
        %v821 = vpop.f32.mrf.mxu0
        %v822 = vadd.f32 0.0, %v821
        %823 = vdwg.mxu0
        %v824 = vmul.f32 %v782, %v530
        %v825 = vmul.f32 %v802, %v531
        %v826 = vmul.f32 %v822, %v532
        %s827 = sadd.s32 %s539, 1
        %s828 = smul.u32 %s827, 3
        %s829 = smul.addr %s828, 8
        %s830 = scalar_lea.vmem [#allocation3], %s829
        %831 = vst [vmem:[%s830] sm:$0xff] %v824
        %832 = vst [vmem:[%s830 + $0x8] sm:$0xff] %v825
        %833 = vst.msk [vmem:[%s830 + $0x10] sm:$0xff] %vm545, %v826
        %v834 = vmul.f32 %v824, %v824
        %v835 = vmul.f32 %v825, %v825
        %v836 = vmul.f32 %v826, %v826
        %v837 = vadd.f32 %v824, %v825
        %v838 = vsel %vm545, %v826, 0.0
        %v839 = vadd.f32 %v837, %v838
        %840 = vadd.xlane.f32.xlu0 %v839
        %v841 = vpop.xlane.xlu0 %840
        %v842 = vadd.f32 %v834, %v835
        %v843 = vsel %vm545, %v836, 0.0
        %v844 = vadd.f32 %v842, %v843
        %845 = vadd.xlane.f32.xlu0 %v844
        %v846 = vpop.xlane.xlu0 %845
        %v847 = vadd.f32 %v560, %v841
        %v848 = vadd.f32 %v561, %v846
        %v849 = vld [vmem:[#allocation4] sm:$0xff]
        %v850 = vld [vmem:[#allocation4 + $0x8] sm:$0xff]
        %v851 = vadd.f32 %v849, %v847
        %v852 = vadd.f32 %v850, %v848
        %vm853 = vcmask 7168
        %854 = vst.msk [vmem:[#allocation4] sm:$0xff] %vm853, %v851
        %855 = vst.msk [vmem:[#allocation4 + $0x8] sm:$0xff] %vm853, %v852
      $region44: #{base_conv_layers_forward.1} parent=35 // pred_fallthru
        _
      %p856 = scmp.eq.s32.totalorder %s19, 1
      // Predicated region
      $region45: #{base_conv_layers_forward.1} parent=35 // pred_check
        %p857 = pneg %p856
      $region46: #{base_conv_layers_forward.1} parent=35 // pred_check_branch
        %859 = sbr.rel (%p857) target = $region48
      $region47: #{base_conv_layers_forward.1} parent=35 // pred_region
        %v860 = vld [vmem:[#allocation4] sm:$0xff]
        %v861 = vld [vmem:[#allocation4 + $0x8] sm:$0xff]
        %v862 = vmul.f32 %v860, 0.001953125
        %v863 = vmul.f32 %v861, 0.001953125
        %v864 = vmul.f32 %v862, %v862
        %v865 = vsub.f32 %v863, %v864
        %v866 = vmax.f32 %v865, 0.0
        %v867 = vadd.f32 %v866, 1e-05
        %v868 = vrsqrt.pop %v867
        %v869 = vmul.f32 %v868, %v867
        %v870 = vmul.f32 %v869, %v868
        %v871 = vmul.f32 0.5, %v870
        %v872 = vsub.f32 1.5, %v871
        %v873 = vmul.f32 %v868, %v872
        %vm874 = vweird.f32 %v867
        %vm875 = vweird.f32 %v868
        %vm876 = vmor %vm874, %vm875
        %v877 = vsel %vm876, %v868, %v873
        %v878 = vld [vmem:[%s3] sm:$0xff]
        %v879 = vld [vmem:[%s3 + $0x8] sm:$0xff]
        %v880 = vmul.f32 %v878, %v877
        %v881 = vmul.f32 %v862, %v880
        %v882 = vsub.f32 %v879, %v881
        %s883 = smul.u32 %s20, 2
        %s884 = smul.u32 %s883, 3
        %s885 = smul.addr %s884, 8
        %s886 = scalar_lea.vmem [#allocation3], %s885
        %v887 = vld [vmem:[%s886] sm:$0xff]
        %v888 = vld [vmem:[%s886 + $0x8] sm:$0xff]
        %v889 = vld [vmem:[%s886 + $0x10] sm:$0xff]
        %891 = vset.pattern.permute.xlu0 0
        %892 = vperm.xlu0 %891, %v880
        %v893 = vpop.permute.xlu0 %892
        %v895 = vmul.f32 %v887, %v893
        %v896 = vmul.f32 %v888, %v893
        %v897 = vmul.f32 %v889, %v893
        %899 = vset.pattern.permute.xlu0 0
        %900 = vperm.xlu0 %899, %v882
        %v901 = vpop.permute.xlu0 %900
        %v903 = vadd.f32 %v895, %v901
        %v904 = vadd.f32 %v896, %v901
        %v905 = vadd.f32 %v897, %v901
        %v906 = vmax.f32 %v903, 0.0
        %v907 = vmax.f32 %v904, 0.0
        %v908 = vmax.f32 %v905, 0.0
        %909 = vst [vmem:[%s229] sm:$0xff] %v906
        %910 = vst [vmem:[%s229 + $0x8] sm:$0xff] %v907
        %vm911 = vcmask 261120
        %912 = vst.msk [vmem:[%s229 + $0x10] sm:$0xff] %vm911, %v908
        %s913 = sadd.s32 %s883, 1
        %s914 = smul.u32 %s913, 3
        %s915 = smul.addr %s914, 8
        %s916 = scalar_lea.vmem [#allocation3], %s915
        %v917 = vld [vmem:[%s916] sm:$0xff]
        %v918 = vld [vmem:[%s916 + $0x8] sm:$0xff]
        %v919 = vld [vmem:[%s916 + $0x10] sm:$0xff]
        %v920 = vmul.f32 %v917, %v893
        %v921 = vmul.f32 %v918, %v893
        %v922 = vmul.f32 %v919, %v893
        %v923 = vadd.f32 %v920, %v901
        %v924 = vadd.f32 %v921, %v901
        %v925 = vadd.f32 %v922, %v901
        %v926 = vmax.f32 %v923, 0.0
        %v927 = vmax.f32 %v924, 0.0
        %v928 = vmax.f32 %v925, 0.0
        %s929 = scalar_lea.vmem %s229, 24
        %930 = vst [vmem:[%s929] sm:$0xff] %v926
        %931 = vst [vmem:[%s929 + $0x8] sm:$0xff] %v927
        %932 = vst.msk [vmem:[%s929 + $0x10] sm:$0xff] %vm911, %v928
      $region48: #{base_conv_layers_forward.1} parent=35 // pred_fallthru
        _
      %s933 = smul.u32 %s20, %s19
      %s934 = smul.u32 2, %s933
      %p935 = scmp.lt.s32.totalorder %s934, 1
      %s936 = scalar_select %p935, %s934, 1
      %s937 = smul.addr %s936, 3
      %s938 = smul.addr %s937, 8
      %s939 = scalar_lea.vmem %s4, %s938
      // Predicated region
      $region49: #{base_conv_layers_forward.1} parent=35 // pred_check
        %p940 = pneg %p140
      $region50: #{base_conv_layers_forward.1} parent=35 // pred_check_branch
        %942 = sbr.rel (%p940) target = $region52
      $region51: #{base_conv_layers_forward.1} parent=35 // pred_region
        %s943 = smul.u32 %s20, %s19
        %s944 = smul.u32 2, %s943
      $region52: #{base_conv_layers_forward.1} parent=35 // pred_fallthru
        _
    $region36: #{base_conv_layers_forward.1} parent=5 // pred_fallthru
      _
    %p945 = scmp.le.s32.totalorder 2, %s10
    // Predicated region
    $region53: #{base_conv_layers_forward.1} parent=5 // pred_check
      %p946 = pneg %p945
    $region54: #{base_conv_layers_forward.1} parent=5 // pred_check_branch
      %948 = sbr.rel (%p946) target = $region56
    $region55: #{base_conv_layers_forward.1} parent=5 // pred_region
      %s949 = ssub.s32 %s10, 2
      // Predicated region
      $region57: #{base_conv_layers_forward.1} parent=55 // pred_check
        %p950 = pneg %p146
      $region58: #{base_conv_layers_forward.1} parent=55 // pred_check_branch
        %952 = sbr.rel (%p950) target = $region60
      $region59: #{base_conv_layers_forward.1} parent=55 // pred_region
        %s953 = smul.u32 %s22, %s21
        %s954 = smul.u32 2, %s953
        %p955 = scmp.lt.s32.totalorder %s954, 1
        %s956 = scalar_select %p955, %s954, 1
        %s957 = smul.addr %s956, 3
        %s958 = smul.addr %s957, 8
        %s959 = scalar_lea.vmem %s4, %s958
      $region60: #{base_conv_layers_forward.1} parent=55 // pred_fallthru
        _
    $region56: #{base_conv_layers_forward.1} parent=5 // pred_fallthru
      _
  $region6: #{base_conv_layers_forward.1} parent=0 // loop_footer
    %s14 = sadd.s32 1, %s10
  $region7: #{base_conv_layers_forward.1} parent=0 // loop_footer_branch
    %9 = sbr.rel target = $region3
  $region8: #{base_conv_layers_forward.1} parent=0 // loop_exit
    _

</llo_original>
